<compile_context>
chip_gen: v7x
topology: tpu7x:2x2x1
jax: 0.10.0
libtpu: 0.0.40
codegen_flags: <defaults>
</compile_context>

<pallas_src>
import functools

import jax
import jax.numpy as jnp
from jax.experimental import pallas as pl
from jax.experimental.pallas import tpu as pltpu


H = 64          # hidden width of fc1/fc2/fc3/RNN
NPACK = 3 * H   # packed matmul output width: [h1 | g1 | g2]


def _round_up(n, m):
    return ((n + m - 1) // m) * m


def mr_kernel(x_ref, wpack_ref, bpack_ref, whh_t_ref,
              wf_h1_ref, wf_h_ref, bf_ref, out_ref):
    f32 = jnp.float32

    # One fused MXU push: [TB, Dpad] @ [Dpad, 192] -> [h1 | g1+b2' | g2+b3']
    y = jnp.dot(x_ref[...], wpack_ref[...], preferred_element_type=f32)
    y = y + bpack_ref[...]

    h1 = y[:, 0 * H:1 * H]                      # fc1 output (dropout = identity)

    # RNN step 1 (h0 = 0): fc2 + Wih + biases already folded into the packed matmul
    hA = jnp.tanh(y[:, 1 * H:2 * H])
    # RNN step 2
    h = jnp.tanh(y[:, 2 * H:3 * H]
                 + jnp.dot(hA, whh_t_ref[...], preferred_element_type=f32))

    # Final head fc(concat([h1, h])) as two broadcast-mul + lane reductions (VPU/XLU)
    out_ref[...] = (jnp.sum(h1 * wf_h1_ref[...], axis=-1, keepdims=True)
                    + jnp.sum(h * wf_h_ref[...], axis=-1, keepdims=True)
                    + bf_ref[...])


def init_params(input_size, key):
    """Deterministic PyTorch-style uniform(-1/sqrt(fan_in), 1/sqrt(fan_in)) init."""
    keys = jax.random.split(key, 16)
    ki = iter(keys)

    def lin(kw, kb, out_f, in_f):
        bound = 1.0 / jnp.sqrt(jnp.float32(in_f))
        w = jax.random.uniform(kw, (out_f, in_f), jnp.float32, -bound, bound)
        b = jax.random.uniform(kb, (out_f,), jnp.float32, -bound, bound)
        return w, b

    p = {}
    p["fc1_w"], p["fc1_b"] = lin(next(ki), next(ki), H, input_size)
    p["fc2_w"], p["fc2_b"] = lin(next(ki), next(ki), H, 23)
    p["fc3_w"], p["fc3_b"] = lin(next(ki), next(ki), H, 23)
    # nn.RNN(64, 64, 1): weight_ih_l0 [64,64], weight_hh_l0 [64,64], biases [64]
    p["rnn_wih"], p["rnn_bih"] = lin(next(ki), next(ki), H, H)
    p["rnn_whh"], p["rnn_bhh"] = lin(next(ki), next(ki), H, H)
    p["fc_w"], p["fc_b"] = lin(next(ki), next(ki), 1, 2 * H)
    return p


def _pack_params(params, input_size):
    """Wrapper-side (glue-only) algebraic folding + block-diagonal packing."""
    D = input_size
    width = D + 46
    d_pad = _round_up(width, 128)

    wih_t = params["rnn_wih"].T                       # [64, 64]
    b_rnn = params["rnn_bih"] + params["rnn_bhh"]     # [64]

    w2p = params["fc2_w"].T @ wih_t                   # [23, 64]  fc2 folded through Wih
    w3p = params["fc3_w"].T @ wih_t                   # [23, 64]  fc3 folded through Wih
    b2p = params["fc2_b"] @ wih_t + b_rnn             # [64]
    b3p = params["fc3_b"] @ wih_t + b_rnn             # [64]

    wpack = jnp.zeros((d_pad, NPACK), jnp.float32)
    wpack = wpack.at[0:D, 0 * H:1 * H].set(params["fc1_w"].T)
    wpack = wpack.at[D:D + 23, 1 * H:2 * H].set(w2p)
    wpack = wpack.at[D + 23:D + 46, 2 * H:3 * H].set(w3p)

    bpack = jnp.concatenate([params["fc1_b"], b2p, b3p]).reshape(1, NPACK)

    wf_h1 = params["fc_w"][:, :H].reshape(1, H)       # head weight for h1
    wf_h = params["fc_w"][:, H:].reshape(1, H)        # head weight for final hidden
    bf = params["fc_b"].reshape(1, 1)

    whh_t = params["rnn_whh"].T                       # [64, 64]
    return wpack, bpack, whh_t, wf_h1, wf_h, bf, d_pad, width


@functools.partial(jax.jit, static_argnames=("input_size",))
def mr_forward(x, params, input_size):
    x = x.astype(jnp.float32)
    B = x.shape[0]

    wpack, bpack, whh_t, wf_h1, wf_h, bf, d_pad, width = _pack_params(params, input_size)

    # Batch tile: multiple of 8, capped so the double-buffered x tile stays small
    # even under v7x's 32 MiB default scoped VMEM.
    TB = 512 if B >= 512 else _round_up(max(B, 1), 8)
    b_pad = _round_up(B, TB)

    # Zero-pad features to Dpad (zero rows of wpack neutralize them) and batch to b_pad.
    x_pad = jnp.zeros((b_pad, d_pad), jnp.float32).at[:B, :width].set(x[:, :width])

    grid = (b_pad // TB,)
    resident = lambda i: (0, 0)   # weights/biases stay VMEM-resident across batch tiles

    out = pl.pallas_call(
        mr_kernel,
        out_shape=jax.ShapeDtypeStruct((b_pad, 1), jnp.float32),
        grid=grid,
        in_specs=[
            pl.BlockSpec((TB, d_pad), lambda i: (i, 0)),   # x tile (pipelined over batch)
            pl.BlockSpec((d_pad, NPACK), resident),        # packed block-diagonal weight
            pl.BlockSpec((1, NPACK), resident),            # packed bias row
            pl.BlockSpec((H, H), resident),                # W_hh^T
            pl.BlockSpec((1, H), resident),                # fc weight, h1 half
            pl.BlockSpec((1, H), resident),                # fc weight, hidden half
            pl.BlockSpec((1, 1), resident),                # fc bias
        ],
        out_specs=pl.BlockSpec((TB, 1), lambda i: (i, 0)),
        compiler_params=pltpu.CompilerParams(
            dimension_semantics=("parallel",)),
    )(x_pad, wpack, bpack, whh_t, wf_h1, wf_h, bf)

    return out[:B]


def mr_reference(x, params, input_size):
    """Pure-JAX reference mirroring the PyTorch forward (eval mode)."""
    x = x.astype(jnp.float32)
    xm = x[:, :input_size]
    x1 = x[:, input_size:input_size + 23]
    x2 = x[:, input_size + 23:input_size + 46]

    h1 = xm @ params["fc1_w"].T + params["fc1_b"]
    a1 = x1 @ params["fc2_w"].T + params["fc2_b"]
    a2 = x2 @ params["fc3_w"].T + params["fc3_b"]

    wih_t = params["rnn_wih"].T
    whh_t = params["rnn_whh"].T
    b = params["rnn_bih"] + params["rnn_bhh"]
    h = jnp.tanh(a1 @ wih_t + b)                 # h0 = 0
    h = jnp.tanh(a2 @ wih_t + h @ whh_t + b)

    cat = jnp.concatenate([h1, h], axis=1)
    return cat @ params["fc_w"].T + params["fc_b"]


if __name__ == "__main__":
    INPUT_SIZE = 32
    BATCH = 2

    key = jax.random.PRNGKey(0)
    k_params, k_x = jax.random.split(key)

    params = init_params(INPUT_SIZE, k_params)
    x = jax.random.normal(k_x, (BATCH, INPUT_SIZE + 46), dtype=jnp.float32)

    out = mr_forward(x, params, INPUT_SIZE)
    jax.block_until_ready(out)
    assert out.shape == (BATCH, 1), out.shape

    ref = mr_reference(x, params, INPUT_SIZE)
    assert jnp.allclose(out, ref, atol=1e-3, rtol=1e-3), (out, ref)

    print("KERNEL_OK")
</pallas_src>

<mosaic_0001>
module attributes {stable_mosaic.version = 11 : i64} {
  func.func @mr_kernel(%arg0: i32, %arg1: memref<8x128xf32, #tpu.memory_space<vmem>>, %arg2: memref<128x192xf32, #tpu.memory_space<vmem>>, %arg3: memref<1x192xf32, #tpu.memory_space<vmem>>, %arg4: memref<64x64xf32, #tpu.memory_space<vmem>>, %arg5: memref<1x64xf32, #tpu.memory_space<vmem>>, %arg6: memref<1x64xf32, #tpu.memory_space<vmem>>, %arg7: memref<1x1xf32, #tpu.memory_space<vmem>>, %arg8: memref<8x1xf32, #tpu.memory_space<vmem>>) attributes {dimension_semantics = [#tpu.dimension_semantics<parallel>], iteration_bounds = array<i64: 1>, scalar_prefetch = 0 : i64, scratch_operands = 0 : i64, tpu.core_type = #tpu.core_type<tc>, window_params = [{transform_indices = @transform_0, window_bounds = array<i64: 8, 128>}, {pipeline_mode = #tpu.pipeline_mode<synchronous>, transform_indices = @transform_1, window_bounds = array<i64: 128, 192>}, {pipeline_mode = #tpu.pipeline_mode<synchronous>, transform_indices = @transform_2, window_bounds = array<i64: 1, 192>}, {pipeline_mode = #tpu.pipeline_mode<synchronous>, transform_indices = @transform_3, window_bounds = array<i64: 64, 64>}, {pipeline_mode = #tpu.pipeline_mode<synchronous>, transform_indices = @transform_4, window_bounds = array<i64: 1, 64>}, {pipeline_mode = #tpu.pipeline_mode<synchronous>, transform_indices = @transform_5, window_bounds = array<i64: 1, 64>}, {pipeline_mode = #tpu.pipeline_mode<synchronous>, transform_indices = @transform_6, window_bounds = array<i64: 1, 1>}, {transform_indices = @transform_7, window_bounds = array<i64: 8, 1>}]} {
    %c0 = arith.constant 0 : index
    %c0_0 = arith.constant 0 : index
    %0 = vector.load %arg1[%c0, %c0_0] : memref<8x128xf32, #tpu.memory_space<vmem>>, vector<8x128xf32>
    %c0_1 = arith.constant 0 : index
    %c0_2 = arith.constant 0 : index
    %1 = vector.load %arg2[%c0_1, %c0_2] : memref<128x192xf32, #tpu.memory_space<vmem>>, vector<128x192xf32>
    %cst = arith.constant dense<0.000000e+00> : vector<8x192xf32>
    %2 = tpu.matmul %0, %1, %cst {dimension_numbers = #tpu.dot_dimension_numbers<[1], [0], [0], [1], [0, 0, 1, 1], [], []>} : vector<8x128xf32>, vector<128x192xf32>, vector<8x192xf32> -> vector<8x192xf32>
    %c0_3 = arith.constant 0 : index
    %c0_4 = arith.constant 0 : index
    %3 = vector.load %arg3[%c0_3, %c0_4] : memref<1x192xf32, #tpu.memory_space<vmem>>, vector<1x192xf32>
    %4 = vector.broadcast %3 : vector<1x192xf32> to vector<8x192xf32>
    %5 = arith.addf %2, %4 : vector<8x192xf32>
    %6 = vector.extract_strided_slice %5 {offsets = [0, 0], sizes = [8, 64], strides = [1, 1]} : vector<8x192xf32> to vector<8x64xf32>
    %7 = vector.extract_strided_slice %5 {offsets = [0, 64], sizes = [8, 64], strides = [1, 1]} : vector<8x192xf32> to vector<8x64xf32>
    %8 = math.tanh %7 : vector<8x64xf32>
    %9 = vector.extract_strided_slice %5 {offsets = [0, 128], sizes = [8, 64], strides = [1, 1]} : vector<8x192xf32> to vector<8x64xf32>
    %c0_5 = arith.constant 0 : index
    %c0_6 = arith.constant 0 : index
    %10 = vector.load %arg4[%c0_5, %c0_6] : memref<64x64xf32, #tpu.memory_space<vmem>>, vector<64x64xf32>
    %cst_7 = arith.constant dense<0.000000e+00> : vector<8x64xf32>
    %11 = tpu.matmul %8, %10, %cst_7 {dimension_numbers = #tpu.dot_dimension_numbers<[1], [0], [0], [1], [0, 0, 1, 1], [], []>} : vector<8x64xf32>, vector<64x64xf32>, vector<8x64xf32> -> vector<8x64xf32>
    %12 = arith.addf %9, %11 : vector<8x64xf32>
    %13 = math.tanh %12 : vector<8x64xf32>
    %c0_8 = arith.constant 0 : index
    %c0_9 = arith.constant 0 : index
    %14 = vector.load %arg5[%c0_8, %c0_9] : memref<1x64xf32, #tpu.memory_space<vmem>>, vector<1x64xf32>
    %15 = vector.broadcast %14 : vector<1x64xf32> to vector<8x64xf32>
    %16 = arith.mulf %6, %15 : vector<8x64xf32>
    %cst_10 = arith.constant dense<0.000000e+00> : vector<8xf32>
    %17 = vector.multi_reduction <add>, %16, %cst_10 [1] : vector<8x64xf32> to vector<8xf32>
    %18 = vector.shape_cast %17 : vector<8xf32> to vector<8x1xf32>
    %c0_11 = arith.constant 0 : index
    %c0_12 = arith.constant 0 : index
    %19 = vector.load %arg6[%c0_11, %c0_12] : memref<1x64xf32, #tpu.memory_space<vmem>>, vector<1x64xf32>
    %20 = vector.broadcast %19 : vector<1x64xf32> to vector<8x64xf32>
    %21 = arith.mulf %13, %20 : vector<8x64xf32>
    %cst_13 = arith.constant dense<0.000000e+00> : vector<8xf32>
    %22 = vector.multi_reduction <add>, %21, %cst_13 [1] : vector<8x64xf32> to vector<8xf32>
    %23 = vector.shape_cast %22 : vector<8xf32> to vector<8x1xf32>
    %24 = arith.addf %18, %23 : vector<8x1xf32>
    %c0_14 = arith.constant 0 : index
    %c0_15 = arith.constant 0 : index
    %25 = vector.load %arg7[%c0_14, %c0_15] : memref<1x1xf32, #tpu.memory_space<vmem>>, vector<1x1xf32>
    %26 = vector.broadcast %25 : vector<1x1xf32> to vector<8x1xf32>
    %27 = arith.addf %24, %26 : vector<8x1xf32>
    %c0_16 = arith.constant 0 : index
    %c0_17 = arith.constant 0 : index
    %28 = vector.load %arg8[%c0_16, %c0_17] : memref<8x1xf32, #tpu.memory_space<vmem>>, vector<8x1xf32>
    tpu.vector_store %arg8[%c0_16, %c0_17], %27 {strides = array<i32>} : memref<8x1xf32, #tpu.memory_space<vmem>>, vector<8x1xf32>,
    return
  }
  func.func @transform_0(%arg0: i32) -> (i32, i32) {
    %c0_i32 = arith.constant 0 : i32
    %c0_i32_0 = arith.constant 0 : i32
    return %arg0, %c0_i32 : i32, i32
  }
  func.func @transform_1(%arg0: i32) -> (i32, i32) {
    %c0_i32 = arith.constant 0 : i32
    %c0_i32_0 = arith.constant 0 : i32
    %c0_i32_1 = arith.constant 0 : i32
    return %c0_i32, %c0_i32_0 : i32, i32
  }
  func.func @transform_2(%arg0: i32) -> (i32, i32) {
    %c0_i32 = arith.constant 0 : i32
    %c0_i32_0 = arith.constant 0 : i32
    %c0_i32_1 = arith.constant 0 : i32
    return %c0_i32, %c0_i32_0 : i32, i32
  }
  func.func @transform_3(%arg0: i32) -> (i32, i32) {
    %c0_i32 = arith.constant 0 : i32
    %c0_i32_0 = arith.constant 0 : i32
    %c0_i32_1 = arith.constant 0 : i32
    return %c0_i32, %c0_i32_0 : i32, i32
  }
  func.func @transform_4(%arg0: i32) -> (i32, i32) {
    %c0_i32 = arith.constant 0 : i32
    %c0_i32_0 = arith.constant 0 : i32
    %c0_i32_1 = arith.constant 0 : i32
    return %c0_i32, %c0_i32_0 : i32, i32
  }
  func.func @transform_5(%arg0: i32) -> (i32, i32) {
    %c0_i32 = arith.constant 0 : i32
    %c0_i32_0 = arith.constant 0 : i32
    %c0_i32_1 = arith.constant 0 : i32
    return %c0_i32, %c0_i32_0 : i32, i32
  }
  func.func @transform_6(%arg0: i32) -> (i32, i32) {
    %c0_i32 = arith.constant 0 : i32
    %c0_i32_0 = arith.constant 0 : i32
    %c0_i32_1 = arith.constant 0 : i32
    return %c0_i32, %c0_i32_0 : i32, i32
  }
  func.func @transform_7(%arg0: i32) -> (i32, i32) {
    %c0_i32 = arith.constant 0 : i32
    %c0_i32_0 = arith.constant 0 : i32
    return %arg0, %c0_i32 : i32, i32
  }
}

</mosaic_0001>

<llo_original>
// kernel: mr_forward.1
$region0: #{mr_forward.1}
  #allocation0 [shape = 'u32[]', space=smem, size = 0x4, offset = 0x4, fixed_abs, tag = 'smem constant byte address 0x4 - core index']
  #allocation1 [shape = 'u32[144,128]{1,0:T(1,128)}', space=vmem, size = 0x12000, scoped, tag = 'internal scratch']
  #allocation2 [shape = 'f32[1,1]{1,0:T(1,128)S(1)}', space=vmem, size = 0x200, scoped, tag = 'scoped memory for mr_forward.1']
  %s0 = inlined_call_operand.vmem [shape: f32[8,128], index: 0, kind: input, shape index: {}]
  %s1 = inlined_call_operand.vmem [shape: f32[128,192], index: 1, kind: input, shape index: {}]
  %s2 = inlined_call_operand.vmem [shape: f32[1,192], index: 2, kind: input, shape index: {}]
  %s3 = inlined_call_operand.vmem [shape: f32[64,64], index: 3, kind: input, shape index: {}]
  %s4 = inlined_call_operand.vmem [shape: f32[1,64], index: 4, kind: input, shape index: {}]
  %s5 = inlined_call_operand.vmem [shape: f32[1,64], index: 5, kind: input, shape index: {}]
  %s6 = inlined_call_operand.<no memory space> [shape: f32[1,1], index: 6, kind: input, shape index: {}]
  %s7 = inlined_call_operand.vmem [shape: f32[8,1], index: 7, kind: output, shape index: {}]
  %s8 = sld [smem:[#allocation0]]
  $region38: #{mr_forward.1} parent=0
    _
  %s10 = ssub.s32 1, %s8
  %s11 = scalar_select 0, %s10, %s8
  %v12 = vstv %s6
  %13 = vst [vmem:[#allocation2] sm:$0x1] %v12
  // Predicated region
  $region2: #{mr_forward.1} parent=0 // pred_check
    _
  $region3: #{mr_forward.1} parent=0 // pred_check_branch
    %15 = sbr.rel (0) target = $region5
  $region4: #{mr_forward.1} parent=0 // pred_region
    _
  $region5: #{mr_forward.1} parent=0 // pred_fallthru
    _
  // Predicated region
  $region6: #{mr_forward.1} parent=0 // pred_check
    _
  $region7: #{mr_forward.1} parent=0 // pred_check_branch
    %17 = sbr.rel (0) target = $region9
  $region8: #{mr_forward.1} parent=0 // pred_region
    _
  $region9: #{mr_forward.1} parent=0 // pred_fallthru
    _
  // Predicated region
  $region10: #{mr_forward.1} parent=0 // pred_check
    _
  $region11: #{mr_forward.1} parent=0 // pred_check_branch
    %19 = sbr.rel (0) target = $region13
  $region12: #{mr_forward.1} parent=0 // pred_region
    _
  $region13: #{mr_forward.1} parent=0 // pred_fallthru
    _
  // Predicated region
  $region14: #{mr_forward.1} parent=0 // pred_check
    _
  $region15: #{mr_forward.1} parent=0 // pred_check_branch
    %21 = sbr.rel (0) target = $region17
  $region16: #{mr_forward.1} parent=0 // pred_region
    _
  $region17: #{mr_forward.1} parent=0 // pred_fallthru
    _
  // Predicated region
  $region18: #{mr_forward.1} parent=0 // pred_check
    _
  $region19: #{mr_forward.1} parent=0 // pred_check_branch
    %23 = sbr.rel (0) target = $region21
  $region20: #{mr_forward.1} parent=0 // pred_region
    _
  $region21: #{mr_forward.1} parent=0 // pred_fallthru
    _
  // Predicated region
  $region22: #{mr_forward.1} parent=0 // pred_check
    _
  $region23: #{mr_forward.1} parent=0 // pred_check_branch
    %25 = sbr.rel (0) target = $region25
  $region24: #{mr_forward.1} parent=0 // pred_region
    _
  $region25: #{mr_forward.1} parent=0 // pred_fallthru
    _
  // Predicated region
  $region26: #{mr_forward.1} parent=0 // pred_check
    _
  $region27: #{mr_forward.1} parent=0 // pred_check_branch
    %27 = sbr.rel (0) target = $region29
  $region28: #{mr_forward.1} parent=0 // pred_region
    _
  $region29: #{mr_forward.1} parent=0 // pred_fallthru
    _
  %v28 = vld [vmem:[%s0] sm:$0xff]
  %v29 = vld [vmem:[%s1] sm:$0xff]
  %v30 = vld [vmem:[%s1 + $0x8] sm:$0xff]
  %v31 = vld [vmem:[%s1 + $0x10] sm:$0xff]
  %v32 = vld [vmem:[%s1 + $0x18] sm:$0xff]
  %v33 = vld [vmem:[%s1 + $0x20] sm:$0xff]
  %v34 = vld [vmem:[%s1 + $0x28] sm:$0xff]
  %v35 = vld [vmem:[%s1 + $0x30] sm:$0xff]
  %v36 = vld [vmem:[%s1 + $0x38] sm:$0xff]
  %v37 = vld [vmem:[%s1 + $0x40] sm:$0xff]
  %v38 = vld [vmem:[%s1 + $0x48] sm:$0xff]
  %v39 = vld [vmem:[%s1 + $0x50] sm:$0xff]
  %v40 = vld [vmem:[%s1 + $0x58] sm:$0xff]
  %v41 = vld [vmem:[%s1 + $0x60] sm:$0xff]
  %v42 = vld [vmem:[%s1 + $0x68] sm:$0xff]
  %v43 = vld [vmem:[%s1 + $0x70] sm:$0xff]
  %v44 = vld [vmem:[%s1 + $0x78] sm:$0xff]
  %v45 = vld [vmem:[%s1 + $0x80] sm:$0xff]
  %v46 = vld [vmem:[%s1 + $0x88] sm:$0xff]
  %v47 = vld [vmem:[%s1 + $0x90] sm:$0xff]
  %v48 = vld [vmem:[%s1 + $0x98] sm:$0xff]
  %v49 = vld [vmem:[%s1 + $0xa0] sm:$0xff]
  %v50 = vld [vmem:[%s1 + $0xa8] sm:$0xff]
  %v51 = vld [vmem:[%s1 + $0xb0] sm:$0xff]
  %v52 = vld [vmem:[%s1 + $0xb8] sm:$0xff]
  %v53 = vld [vmem:[%s1 + $0xc0] sm:$0xff]
  %v54 = vld [vmem:[%s1 + $0xc8] sm:$0xff]
  %v55 = vld [vmem:[%s1 + $0xd0] sm:$0xff]
  %v56 = vld [vmem:[%s1 + $0xd8] sm:$0xff]
  %v57 = vld [vmem:[%s1 + $0xe0] sm:$0xff]
  %v58 = vld [vmem:[%s1 + $0xe8] sm:$0xff]
  %v59 = vld [vmem:[%s1 + $0xf0] sm:$0xff]
  %v60 = vld [vmem:[%s1 + $0xf8] sm:$0xff]
  %v61 = vld [vmem:[%s2] sm:$0x3]
  %v63 = vlaneseq
  %v64 = vshrl.u32 %v63, 7
  %v65 = vsub.s32 0, %v64
  %v66 = vrot.slane %v61, %v65
  %v67 = vlaneseq
  %v68 = vshrl.u32 %v67, 7
  %v69 = vsub.s32 1, %v68
  %v70 = vrot.slane %v61, %v69
  %73 = vmatprep.subr.mxu0 %v30
  %74 = vmatpush1.msra.mxu0 %v29
  %75 = vmatprep.subr.mxu0 %v32
  %76 = vmatpush1.msra.mxu0 %v31
  %77 = vmatprep.subr.mxu0 %v34
  %78 = vmatpush1.msra.mxu0 %v33
  %79 = vmatprep.subr.mxu0 %v36
  %80 = vmatpush1.msra.mxu0 %v35
  %81 = vmatprep.subr.mxu0 %v38
  %82 = vmatpush1.msra.mxu0 %v37
  %83 = vmatprep.subr.mxu0 %v40
  %84 = vmatpush1.msra.mxu0 %v39
  %85 = vmatprep.subr.mxu0 %v42
  %86 = vmatpush1.msra.mxu0 %v41
  %87 = vmatprep.subr.mxu0 %v44
  %88 = vmatpush1.msra.mxu0 %v43
  %89 = vmatprep.subr.mxu0 %v46
  %90 = vmatpush1.msra.mxu0 %v45
  %91 = vmatprep.subr.mxu0 %v48
  %92 = vmatpush1.msra.mxu0 %v47
  %93 = vmatprep.subr.mxu0 %v50
  %94 = vmatpush1.msra.mxu0 %v49
  %95 = vmatprep.subr.mxu0 %v52
  %96 = vmatpush1.msra.mxu0 %v51
  %97 = vmatprep.subr.mxu0 %v54
  %98 = vmatpush1.msra.mxu0 %v53
  %99 = vmatprep.subr.mxu0 %v56
  %100 = vmatpush1.msra.mxu0 %v55
  %101 = vmatprep.subr.mxu0 %v58
  %102 = vmatpush1.msra.mxu0 %v57
  %103 = vmatprep.subr.mxu0 %v60
  %104 = vmatpush1.msra.mxu0 %v59
  %105 = vmatprep.subr.mxu0 0.0
  %106 = vmatpush1.msra.mxu0 0.0
  %107 = vmatprep.subr.mxu0 0.0
  %108 = vmatpush1.msra.mxu0 0.0
  %109 = vmatprep.subr.mxu0 0.0
  %110 = vmatpush1.msra.mxu0 0.0
  %111 = vmatprep.subr.mxu0 0.0
  %112 = vmatpush1.msra.mxu0 0.0
  %113 = vmatprep.subr.mxu0 0.0
  %114 = vmatpush1.msra.mxu0 0.0
  %115 = vmatprep.subr.mxu0 0.0
  %116 = vmatpush1.msra.mxu0 0.0
  %117 = vmatprep.subr.mxu0 0.0
  %118 = vmatpush1.msra.mxu0 0.0
  %119 = vmatprep.subr.mxu0 0.0
  %120 = vmatpush1.msra.mxu0 0.0
  %121 = vmatprep.subr.mxu0 0.0
  %122 = vmatpush1.msra.mxu0 0.0
  %123 = vmatprep.subr.mxu0 0.0
  %124 = vmatpush1.msra.mxu0 0.0
  %125 = vmatprep.subr.mxu0 0.0
  %126 = vmatpush1.msra.mxu0 0.0
  %127 = vmatprep.subr.mxu0 0.0
  %128 = vmatpush1.msra.mxu0 0.0
  %129 = vmatprep.subr.mxu0 0.0
  %130 = vmatpush1.msra.mxu0 0.0
  %131 = vmatprep.subr.mxu0 0.0
  %132 = vmatpush1.msra.mxu0 0.0
  %133 = vmatprep.subr.mxu0 0.0
  %134 = vmatpush1.msra.mxu0 0.0
  %135 = vmatprep.subr.mxu0 0.0
  %136 = vmatpush1.msra.mxu0 0.0
  %137 = vmatprep.mubr.f32.mxu0 0.0
  %138 = vmatmul.mubr.f32.gmra.mrb[0].mxu0 %v28
  %v139 = vpop.f32.mrb[0].mxu0
  %v140 = vadd.f32 %v66, %v139
  %v141 = vpop.f32.mrb[0].mxu0
  %v142 = vadd.f32 %v70, %v141
  %143 = vdwg.mxu0
  %v144 = vtanh.pop %v140
  %v145 = vld [vmem:[%s3] sm:$0xff]
  %v146 = vld [vmem:[%s3 + $0x8] sm:$0xff]
  %v147 = vld [vmem:[%s3 + $0x10] sm:$0xff]
  %v148 = vld [vmem:[%s3 + $0x18] sm:$0xff]
  %v149 = vld [vmem:[%s3 + $0x20] sm:$0xff]
  %v150 = vld [vmem:[%s3 + $0x28] sm:$0xff]
  %v151 = vld [vmem:[%s3 + $0x30] sm:$0xff]
  %v152 = vld [vmem:[%s3 + $0x38] sm:$0xff]
  %154 = vrot.lane.b32.xlu0 %v144, 64
  %v155 = vpop.permute.xlu0 %154
  %vm156 = vcmask 523264
  %v157 = vsel %vm156, %v155, 0
  %159 = vmatprep.subr.mxu0 0.0
  %160 = vmatpush1.msra.mxu0 %v145
  %161 = vmatprep.subr.mxu0 0.0
  %162 = vmatpush1.msra.mxu0 %v146
  %163 = vmatprep.subr.mxu0 0.0
  %164 = vmatpush1.msra.mxu0 %v147
  %165 = vmatprep.subr.mxu0 0.0
  %166 = vmatpush1.msra.mxu0 %v148
  %167 = vmatprep.subr.mxu0 0.0
  %168 = vmatpush1.msra.mxu0 %v149
  %169 = vmatprep.subr.mxu0 0.0
  %170 = vmatpush1.msra.mxu0 %v150
  %171 = vmatprep.subr.mxu0 0.0
  %172 = vmatpush1.msra.mxu0 %v151
  %173 = vmatprep.subr.mxu0 0.0
  %174 = vmatpush1.msra.mxu0 %v152
  %175 = vmatprep.subr.mxu0 0.0
  %176 = vmatpush1.msra.mxu0 0.0
  %177 = vmatprep.subr.mxu0 0.0
  %178 = vmatpush1.msra.mxu0 0.0
  %179 = vmatprep.subr.mxu0 0.0
  %180 = vmatpush1.msra.mxu0 0.0
  %181 = vmatprep.subr.mxu0 0.0
  %182 = vmatpush1.msra.mxu0 0.0
  %183 = vmatprep.subr.mxu0 0.0
  %184 = vmatpush1.msra.mxu0 0.0
  %185 = vmatprep.subr.mxu0 0.0
  %186 = vmatpush1.msra.mxu0 0.0
  %187 = vmatprep.subr.mxu0 0.0
  %188 = vmatpush1.msra.mxu0 0.0
  %189 = vmatprep.subr.mxu0 0.0
  %190 = vmatpush1.msra.mxu0 0.0
  %191 = vmatprep.subr.mxu0 0.0
  %192 = vmatpush1.msra.mxu0 0.0
  %193 = vmatprep.subr.mxu0 0.0
  %194 = vmatpush1.msra.mxu0 0.0
  %195 = vmatprep.subr.mxu0 0.0
  %196 = vmatpush1.msra.mxu0 0.0
  %197 = vmatprep.subr.mxu0 0.0
  %198 = vmatpush1.msra.mxu0 0.0
  %199 = vmatprep.subr.mxu0 0.0
  %200 = vmatpush1.msra.mxu0 0.0
  %201 = vmatprep.subr.mxu0 0.0
  %202 = vmatpush1.msra.mxu0 0.0
  %203 = vmatprep.subr.mxu0 0.0
  %204 = vmatpush1.msra.mxu0 0.0
  %205 = vmatprep.subr.mxu0 0.0
  %206 = vmatpush1.msra.mxu0 0.0
  %207 = vmatprep.subr.mxu0 0.0
  %208 = vmatpush1.msra.mxu0 0.0
  %209 = vmatprep.subr.mxu0 0.0
  %210 = vmatpush1.msra.mxu0 0.0
  %211 = vmatprep.subr.mxu0 0.0
  %212 = vmatpush1.msra.mxu0 0.0
  %213 = vmatprep.subr.mxu0 0.0
  %214 = vmatpush1.msra.mxu0 0.0
  %215 = vmatprep.subr.mxu0 0.0
  %216 = vmatpush1.msra.mxu0 0.0
  %217 = vmatprep.subr.mxu0 0.0
  %218 = vmatpush1.msra.mxu0 0.0
  %219 = vmatprep.subr.mxu0 0.0
  %220 = vmatpush1.msra.mxu0 0.0
  %221 = vmatprep.subr.mxu0 0.0
  %222 = vmatpush1.msra.mxu0 0.0
  %223 = vmatprep.mubr.f32.mxu0 0.0
  %224 = vmatmul.mubr.f32.gmra.mrb[0].mxu0 %v157
  %v225 = vpop.f32.mrb[0].mxu0
  %v226 = vadd.f32 0.0, %v225
  %v227 = vpop.f32.mrb[0].mxu0
  %228 = vdwg.mxu0
  %v229 = vadd.f32 %v142, %v226
  %v230 = vtanh.pop %v229
  %v231 = vld [vmem:[%s4] sm:$0x1]
  %v233 = vlaneseq
  %v234 = vshrl.u32 %v233, 7
  %v235 = vsub.s32 0, %v234
  %v236 = vrot.slane %v231, %v235
  %v238 = vmul.f32 %v140, %v236
  %v239 = vsel %vm156, %v238, 0.0
  %240 = vadd.xlane.f32.xlu0 %v239
  %v241 = vpop.xlane.xlu0 %240
  %v242 = vld [vmem:[%s5] sm:$0x1]
  %v244 = vlaneseq
  %v245 = vshrl.u32 %v244, 7
  %v246 = vsub.s32 0, %v245
  %v247 = vrot.slane %v242, %v246
  %v249 = vmul.f32 %v230, %v247
  %v250 = vsel %vm156, %v249, 0.0
  %251 = vadd.xlane.f32.xlu0 %v250
  %v252 = vpop.xlane.xlu0 %251
  %v253 = vadd.f32 %v241, %v252
  %v254 = vld [vmem:[#allocation2] sm:$0x1]
  %v256 = vlaneseq
  %v257 = vshrl.u32 %v256, 7
  %v258 = vsub.s32 0, %v257
  %v259 = vrot.slane %v254, %v258
  %v261 = vadd.f32 %v253, %v259
  %vm262 = vcmask 7168
  %263 = vst.msk [vmem:[%s7] sm:$0xff] %vm262, %v261
  // Predicated region
  $region30: #{mr_forward.1} parent=0 // pred_check
    _
  $region31: #{mr_forward.1} parent=0 // pred_check_branch
    %265 = sbr.rel (0) target = $region33
  $region32: #{mr_forward.1} parent=0 // pred_region
    _
  $region33: #{mr_forward.1} parent=0 // pred_fallthru
    _
  // Predicated region
  $region34: #{mr_forward.1} parent=0 // pred_check
    _
  $region35: #{mr_forward.1} parent=0 // pred_check_branch
    %267 = sbr.rel (0) target = $region37
  $region36: #{mr_forward.1} parent=0 // pred_region
    _
  $region37: #{mr_forward.1} parent=0 // pred_fallthru
    _

</llo_original>
